<compile_context>
chip_gen: v7x
topology: tpu7x:2x2x1
jax: 0.10.0
libtpu: 0.0.40
codegen_flags: <defaults>
</compile_context>

<pallas_src>
import jax
import jax.numpy as jnp
from jax.experimental import pallas as pl
from jax.experimental.pallas import tpu as pltpu


def _round_up(v, m):
    return ((v + m - 1) // m) * m


# ----------------------------------------------------------------------------
# Pallas kernel — per-voxel hot path, channel-first / lane-dense blocks:
#   s    = WxT @ x + g1         (x conv1x1+BN folded; g1 already convolved,
#                                 BN-folded, bias-fused and upsampled)   (Cm, TV)
#   a    = LeakyReLU(s, 0.01)
#   psi  = sigmoid(WpsiT @ a + bpsi)                                     (1,  TV)
#   out  = x * psi              (psi broadcasts over the Ci sublanes)
# ----------------------------------------------------------------------------
def attention_gate_kernel(x_ref, g1_ref, wxT_ref, wpsiT_ref, bpsi_ref, out_ref):
    x = x_ref[...]                                               # (Ci, TV) io dtype

    s = jnp.dot(wxT_ref[...], x, preferred_element_type=jnp.float32)
    s = s + g1_ref[...].astype(jnp.float32)                      # (Cm, TV) f32

    a = jnp.maximum(s, jnp.float32(0.01) * s)                    # LeakyReLU(0.01)

    psi = jnp.dot(wpsiT_ref[...], a,
                  preferred_element_type=jnp.float32) + bpsi_ref[...]   # (1, TV)
    psi = jax.nn.sigmoid(psi)                                    # f32 EUP path

    out_ref[...] = (x.astype(jnp.float32) * psi).astype(out_ref.dtype)  # (Ci, TV)


def _fold_bn(w, b, gamma, beta, mean, var, eps=1e-5):
    """Fold eval-mode BatchNorm into a preceding 1x1 conv (w: (Cin, Cout))."""
    scale = gamma / jnp.sqrt(var + eps)
    w_eff = w * scale[None, :]
    b_eff = (b - mean) * scale + beta
    return w_eff, b_eff


def attention_gate(x, g, params, *, io_dtype=None,
                   vmem_tile_budget_bytes=40 << 20, eps=1e-5):
    """x: (N, Ci, D, H, W), g: (N, Cg, Dg, Hg, Wg)  ->  (N, Ci, D, H, W).

    io_dtype=None keeps the input dtype (exact module semantics);
    io_dtype=jnp.bfloat16 enables the halved-bandwidth fast path.
    """
    N, Ci, D, H, W = x.shape
    io_dtype = jnp.dtype(io_dtype) if io_dtype is not None else jnp.dtype(x.dtype)

    # ---- fold eval-mode BatchNorm into the 1x1 convs (parameter glue) ----
    wx_eff, bx_eff = _fold_bn(params["wx"], params["bx"], params["gx_gamma"],
                              params["gx_beta"], params["gx_mean"], params["gx_var"], eps)
    wg_eff, bg_eff = _fold_bn(params["wg"], params["bg"], params["gg_gamma"],
                              params["gg_beta"], params["gg_mean"], params["gg_var"], eps)
    wpsi_eff, bpsi_eff = _fold_bn(params["wpsi"], params["bpsi"],
                                  params["gp_gamma"], params["gp_beta"],
                                  params["gp_mean"], params["gp_var"], eps)
    Cm = wx_eff.shape[1]

    # ---- g branch at COARSE resolution (matches PyTorch: W_g then resize g1).
    # bx is fused here too: per-channel constants commute with the normalized
    # trilinear interpolation weights, so the kernel adds no bias to s.
    b_sum = bx_eff + bg_eff
    g1 = jnp.einsum("ncdhw,cm->nmdhw", g.astype(jnp.float32),
                    wg_eff.astype(jnp.float32)) + b_sum[None, :, None, None, None]
    if g.shape[2:] != x.shape[2:]:
        # TODO(synk): jax.image.resize trilinear (half-pixel) border behaviour
        # not validated against PyTorch F.interpolate(align_corners=False).
        g1 = jax.image.resize(g1, (N, Cm, D, H, W), method="trilinear")

    # Flatten spatial dims only (contiguous -> free, no transpose, no pad).
    DHW = D * H * W
    xf = x.reshape(N, Ci, DHW).astype(io_dtype)
    g1f = g1.reshape(N, Cm, DHW).astype(io_dtype)

    # ---- channel/dtype-aware voxel tile, solved from a VMEM budget ----
    io_bytes = io_dtype.itemsize
    row_tile_io = (8 * 4) // io_bytes          # sublane-tile rows: f32=8, bf16=16
    ci_pad = _round_up(Ci, row_tile_io)
    cm_pad = _round_up(Cm, row_tile_io)
    ci_pad_f32 = _round_up(Ci, 8)
    cm_pad_f32 = _round_up(Cm, 8)
    per_voxel = (2 * io_bytes * (2 * ci_pad + cm_pad)         # double-buffered x, g1, out
                 + 4 * (2 * cm_pad_f32 + ci_pad_f32))         # in-kernel f32 temporaries
    tv = int(vmem_tile_budget_bytes // per_voxel)
    tv = max((tv // 512) * 512, 512)
    # Keep >= ~4 grid points overall (megacore sharding + pipeline overlap,
    # important on v7x when N is small).
    min_tiles = -(-4 // N)
    split_cap = ((DHW // min_tiles) // 512) * 512
    if split_cap >= 512:
        tv = min(tv, split_cap)
    if tv >= DHW:
        tv = DHW                                # full extent is always a legal block
    TV = tv
    grid = (N, pl.cdiv(DHW, TV))

    # ---- resident weights, channel-first for the lane-dense layout ----
    wxT = jnp.transpose(wx_eff).astype(io_dtype)          # (Cm, Ci) main matmul
    wpsiT = jnp.transpose(wpsi_eff).astype(jnp.float32)   # (1, Cm)  tiny, keep f32
    bp2 = bpsi_eff.reshape(1, 1).astype(jnp.float32)

    weight_bytes = wxT.size * io_bytes + wpsiT.size * 4 + 4
    vmem_need = (2 * TV * io_bytes * (2 * ci_pad + cm_pad)
                 + TV * 4 * (2 * cm_pad_f32 + ci_pad_f32)
                 + 2 * weight_bytes)
    vmem_limit = int(min(max(vmem_need + (8 << 20), 24 << 20), 56 << 20))

    out_flat = pl.pallas_call(
        attention_gate_kernel,
        out_shape=jax.ShapeDtypeStruct((N, Ci, DHW), io_dtype),
        grid_spec=pltpu.PrefetchScalarGridSpec(
            num_scalar_prefetch=0,
            grid=grid,
            in_specs=[
                pl.BlockSpec((None, Ci, TV), lambda n, v: (n, 0, v)),   # x tile
                pl.BlockSpec((None, Cm, TV), lambda n, v: (n, 0, v)),   # g1 tile
                pl.BlockSpec((Cm, Ci), lambda n, v: (0, 0)),            # Wx^T (folded)
                pl.BlockSpec((1, Cm), lambda n, v: (0, 0)),             # Wpsi^T (folded)
                pl.BlockSpec((1, 1), lambda n, v: (0, 0)),              # bpsi
            ],
            out_specs=pl.BlockSpec((None, Ci, TV), lambda n, v: (n, 0, v)),
        ),
        compiler_params=pltpu.CompilerParams(
            dimension_semantics=("parallel", "parallel"),
            vmem_limit_bytes=vmem_limit),
    )(xf, g1f, wxT, wpsiT, bp2)

    return out_flat.reshape(N, Ci, D, H, W)


# ----------------------------------------------------------------------------
# Pure-JAX reference (mirrors the PyTorch eval-mode forward exactly)
# ----------------------------------------------------------------------------
def attention_gate_ref(x, g, p, eps=1e-5):
    def conv1x1(v, w, b):  # v: (N,Cin,D,H,W), w: (Cin,Cout)
        return jnp.einsum("ncdhw,co->nodhw", v, w) + b[None, :, None, None, None]

    def bn(v, gamma, beta, mean, var):
        return (v - mean[None, :, None, None, None]) / jnp.sqrt(
            var[None, :, None, None, None] + eps
        ) * gamma[None, :, None, None, None] + beta[None, :, None, None, None]

    x1 = bn(conv1x1(x, p["wx"], p["bx"]), p["gx_gamma"], p["gx_beta"],
            p["gx_mean"], p["gx_var"])
    g1 = bn(conv1x1(g, p["wg"], p["bg"]), p["gg_gamma"], p["gg_beta"],
            p["gg_mean"], p["gg_var"])
    if g1.shape[2:] != x1.shape[2:]:
        g1 = jax.image.resize(g1, g1.shape[:2] + x1.shape[2:], method="trilinear")
    s = g1 + x1
    a = jnp.where(s >= 0, s, 0.01 * s)
    psi = bn(conv1x1(a, p["wpsi"], p["bpsi"]), p["gp_gamma"], p["gp_beta"],
             p["gp_mean"], p["gp_var"])
    psi = jax.nn.sigmoid(psi)
    return x * psi


def make_params(key, ci, cg, cm):
    ks = jax.random.split(key, 12)
    f32 = jnp.float32
    return {
        # conv weights stored as (Cin, Cout); PyTorch weight (Cout,Cin,1,1,1) transposed
        "wx": 0.2 * jax.random.normal(ks[0], (ci, cm), f32),
        "bx": 0.1 * jax.random.normal(ks[1], (cm,), f32),
        "wg": 0.2 * jax.random.normal(ks[2], (cg, cm), f32),
        "bg": 0.1 * jax.random.normal(ks[3], (cm,), f32),
        "wpsi": 0.2 * jax.random.normal(ks[4], (cm, 1), f32),
        "bpsi": 0.1 * jax.random.normal(ks[5], (1,), f32),
        # BatchNorm (eval-mode) affine + running stats
        "gx_gamma": 1.0 + 0.1 * jax.random.normal(ks[6], (cm,), f32),
        "gx_beta": 0.05 * jax.random.normal(ks[7], (cm,), f32),
        "gx_mean": 0.1 * jax.random.normal(ks[8], (cm,), f32),
        "gx_var": 0.5 + jax.random.uniform(ks[9], (cm,), f32),
        "gg_gamma": 1.0 + 0.1 * jax.random.normal(ks[10], (cm,), f32),
        "gg_beta": 0.05 * jax.random.normal(ks[11], (cm,), f32),
        "gg_mean": jnp.zeros((cm,), f32),
        "gg_var": jnp.ones((cm,), f32),
        "gp_gamma": jnp.ones((1,), f32) * 1.1,
        "gp_beta": jnp.ones((1,), f32) * 0.02,
        "gp_mean": jnp.zeros((1,), f32),
        "gp_var": jnp.ones((1,), f32) * 0.9,
    }


if __name__ == "__main__":
    key = jax.random.PRNGKey(0)
    k1, k2, k3, k4 = jax.random.split(key, 4)

    N, Ci, Cg, Cm = 2, 4, 8, 16
    D = H = W = 8

    x = jax.random.normal(k1, (N, Ci, D, H, W), jnp.float32)
    g_same = jax.random.normal(k2, (N, Cg, D, H, W), jnp.float32)
    g_coarse = jax.random.normal(k4, (N, Cg, D // 2, H // 2, W // 2), jnp.float32)
    params = make_params(k3, Ci, Cg, Cm)

    # 1) f32, same-resolution gating signal (exact path).
    out = jax.block_until_ready(attention_gate(x, g_same, params))
    ref = attention_gate_ref(x, g_same, params)
    assert out.shape == x.shape
    assert jnp.allclose(out, ref, atol=1e-4, rtol=1e-4), (
        f"f32 same-res: max abs err = {jnp.max(jnp.abs(out - ref))}")

    # 2) f32, coarse gating signal (conv at coarse res, then trilinear upsample of g1).
    out_c = jax.block_until_ready(attention_gate(x, g_coarse, params))
    ref_c = attention_gate_ref(x, g_coarse, params)
    assert jnp.allclose(out_c, ref_c, atol=1e-4, rtol=1e-4), (
        f"f32 coarse-g: max abs err = {jnp.max(jnp.abs(out_c - ref_c))}")

    # 3) bf16 I/O fast path (bandwidth-bound perf mode), loose tolerance vs f32 ref.
    out_bf = jax.block_until_ready(
        attention_gate(x, g_same, params, io_dtype=jnp.bfloat16))
    err = jnp.max(jnp.abs(out_bf.astype(jnp.float32) - ref))
    assert err < 0.1, f"bf16 I/O: max abs err = {err}"

    print("KERNEL_OK")
</pallas_src>

<mosaic_0001>
module attributes {stable_mosaic.version = 11 : i64} {
  func.func @attention_gate_kernel(%arg0: i32, %arg1: i32, %arg2: memref<1x4x512xf32, #tpu.memory_space<vmem>>, %arg3: memref<1x16x512xf32, #tpu.memory_space<vmem>>, %arg4: memref<16x4xf32, #tpu.memory_space<vmem>>, %arg5: memref<1x16xf32, #tpu.memory_space<vmem>>, %arg6: memref<1x1xf32, #tpu.memory_space<vmem>>, %arg7: memref<1x4x512xf32, #tpu.memory_space<vmem>>) attributes {dimension_semantics = [#tpu.dimension_semantics<parallel>, #tpu.dimension_semantics<parallel>], iteration_bounds = array<i64: 2, 1>, scalar_prefetch = 0 : i64, scratch_operands = 0 : i64, tpu.core_type = #tpu.core_type<tc>, window_params = [{transform_indices = @transform_0, window_bounds = array<i64: 1, 4, 512>}, {transform_indices = @transform_1, window_bounds = array<i64: 1, 16, 512>}, {pipeline_mode = #tpu.pipeline_mode<synchronous>, transform_indices = @transform_2, window_bounds = array<i64: 16, 4>}, {pipeline_mode = #tpu.pipeline_mode<synchronous>, transform_indices = @transform_3, window_bounds = array<i64: 1, 16>}, {pipeline_mode = #tpu.pipeline_mode<synchronous>, transform_indices = @transform_4, window_bounds = array<i64: 1, 1>}, {transform_indices = @transform_5, window_bounds = array<i64: 1, 4, 512>}]} {
    %c0 = arith.constant 0 : index
    %c0_0 = arith.constant 0 : index
    %c0_1 = arith.constant 0 : index
    %0 = vector.load %arg2[%c0, %c0_0, %c0_1] : memref<1x4x512xf32, #tpu.memory_space<vmem>>, vector<1x4x512xf32>
    %1 = vector.shape_cast %0 : vector<1x4x512xf32> to vector<4x512xf32>
    %c0_2 = arith.constant 0 : index
    %c0_3 = arith.constant 0 : index
    %2 = vector.load %arg4[%c0_2, %c0_3] : memref<16x4xf32, #tpu.memory_space<vmem>>, vector<16x4xf32>
    %cst = arith.constant dense<0.000000e+00> : vector<16x512xf32>
    %3 = tpu.matmul %2, %1, %cst {dimension_numbers = #tpu.dot_dimension_numbers<[1], [0], [0], [1], [0, 0, 1, 1], [], []>} : vector<16x4xf32>, vector<4x512xf32>, vector<16x512xf32> -> vector<16x512xf32>
    %c0_4 = arith.constant 0 : index
    %c0_5 = arith.constant 0 : index
    %c0_6 = arith.constant 0 : index
    %4 = vector.load %arg3[%c0_4, %c0_5, %c0_6] : memref<1x16x512xf32, #tpu.memory_space<vmem>>, vector<1x16x512xf32>
    %5 = vector.shape_cast %4 : vector<1x16x512xf32> to vector<16x512xf32>
    %6 = arith.addf %3, %5 : vector<16x512xf32>
    %cst_7 = arith.constant 0.00999999977 : f32
    %7 = vector.broadcast %cst_7 : f32 to vector<16x512xf32>
    %8 = arith.mulf %7, %6 : vector<16x512xf32>
    %9 = arith.maximumf %6, %8 : vector<16x512xf32>
    %c0_8 = arith.constant 0 : index
    %c0_9 = arith.constant 0 : index
    %10 = vector.load %arg5[%c0_8, %c0_9] : memref<1x16xf32, #tpu.memory_space<vmem>>, vector<1x16xf32>
    %cst_10 = arith.constant dense<0.000000e+00> : vector<1x512xf32>
    %11 = tpu.matmul %10, %9, %cst_10 {dimension_numbers = #tpu.dot_dimension_numbers<[1], [0], [0], [1], [0, 0, 1, 1], [], []>} : vector<1x16xf32>, vector<16x512xf32>, vector<1x512xf32> -> vector<1x512xf32>
    %c0_11 = arith.constant 0 : index
    %c0_12 = arith.constant 0 : index
    %12 = vector.load %arg6[%c0_11, %c0_12] : memref<1x1xf32, #tpu.memory_space<vmem>>, vector<1x1xf32>
    %13 = vector.broadcast %12 : vector<1x1xf32> to vector<1x512xf32>
    %14 = arith.addf %11, %13 : vector<1x512xf32>
    %15 = arith.negf %14 : vector<1x512xf32>
    %16 = math.exp %15 : vector<1x512xf32>
    %cst_13 = arith.constant 1.000000e+00 : f32
    %17 = vector.broadcast %cst_13 : f32 to vector<1x512xf32>
    %18 = arith.addf %17, %16 : vector<1x512xf32>
    %19 = arith.divf %17, %18 : vector<1x512xf32>
    %20 = vector.broadcast %19 : vector<1x512xf32> to vector<4x512xf32>
    %21 = arith.mulf %1, %20 : vector<4x512xf32>
    %c0_14 = arith.constant 0 : index
    %c0_15 = arith.constant 0 : index
    %c0_16 = arith.constant 0 : index
    %22 = vector.load %arg7[%c0_14, %c0_15, %c0_16] : memref<1x4x512xf32, #tpu.memory_space<vmem>>, vector<1x4x512xf32>
    %23 = vector.shape_cast %22 : vector<1x4x512xf32> to vector<4x512xf32>
    %24 = vector.shape_cast %21 : vector<4x512xf32> to vector<1x4x512xf32>
    tpu.vector_store %arg7[%c0_14, %c0_15, %c0_16], %24 {strides = array<i32>} : memref<1x4x512xf32, #tpu.memory_space<vmem>>, vector<1x4x512xf32>,
    return
  }
  func.func @transform_0(%arg0: i32, %arg1: i32) -> (i32, i32, i32) {
    %c0_i32 = arith.constant 0 : i32
    %c0_i32_0 = arith.constant 0 : i32
    return %arg0, %c0_i32, %arg1 : i32, i32, i32
  }
  func.func @transform_1(%arg0: i32, %arg1: i32) -> (i32, i32, i32) {
    %c0_i32 = arith.constant 0 : i32
    %c0_i32_0 = arith.constant 0 : i32
    return %arg0, %c0_i32, %arg1 : i32, i32, i32
  }
  func.func @transform_2(%arg0: i32, %arg1: i32) -> (i32, i32) {
    %c0_i32 = arith.constant 0 : i32
    %c0_i32_0 = arith.constant 0 : i32
    %c0_i32_1 = arith.constant 0 : i32
    return %c0_i32, %c0_i32_0 : i32, i32
  }
  func.func @transform_3(%arg0: i32, %arg1: i32) -> (i32, i32) {
    %c0_i32 = arith.constant 0 : i32
    %c0_i32_0 = arith.constant 0 : i32
    %c0_i32_1 = arith.constant 0 : i32
    return %c0_i32, %c0_i32_0 : i32, i32
  }
  func.func @transform_4(%arg0: i32, %arg1: i32) -> (i32, i32) {
    %c0_i32 = arith.constant 0 : i32
    %c0_i32_0 = arith.constant 0 : i32
    %c0_i32_1 = arith.constant 0 : i32
    return %c0_i32, %c0_i32_0 : i32, i32
  }
  func.func @transform_5(%arg0: i32, %arg1: i32) -> (i32, i32, i32) {
    %c0_i32 = arith.constant 0 : i32
    %c0_i32_0 = arith.constant 0 : i32
    return %arg0, %c0_i32, %arg1 : i32, i32, i32
  }
}

</mosaic_0001>

<llo_original>
// kernel: tpu_custom_call.1
$region0: #{tpu_custom_call.1}
  #allocation0 [shape = 'u32[]', space=smem, size = 0x4, offset = 0x4, fixed_abs, tag = 'smem constant byte address 0x4 - core index']
  #allocation1 [shape = 'u32[144,128]{1,0:T(1,128)}', space=vmem, size = 0x12000, scoped, tag = 'internal scratch']
  #allocation2 [shape = 'f32[1,1]{1,0:T(1,128)S(1)}', space=vmem, size = 0x200, scoped, tag = 'scoped memory for tpu_custom_call.1']
  %s0 = inlined_call_operand.hbm [shape: f32[2,4,512], index: 0, kind: input, shape index: {}]
  %s1 = inlined_call_operand.hbm [shape: f32[2,16,512], index: 1, kind: input, shape index: {}]
  %s2 = inlined_call_operand.vmem [shape: f32[16,4], index: 2, kind: input, shape index: {}]
  %s3 = inlined_call_operand.vmem [shape: f32[1,16], index: 3, kind: input, shape index: {}]
  %s4 = inlined_call_operand.<no memory space> [shape: f32[1,1], index: 4, kind: input, shape index: {}]
  %s5 = inlined_call_operand.hbm [shape: f32[2,4,512], index: 5, kind: output, shape index: {}]
  %s6 = sld [smem:[#allocation0]]
  $region61: #{tpu_custom_call.1} parent=0
    _
  %s8 = ssub.s32 1, %s6
  %s9 = scalar_select 0, %s8, %s6
  %v10 = vstv %s4
  %11 = vst [vmem:[#allocation2] sm:$0x1] %v10
  $region1: #{tpu_custom_call.1} parent=0
    #allocation3 [shape = 'u8[16384]{0}', space=vmem, size = 0x4000, scoped, tag = 'input window, operand 0']
    #allocation4 [shape = 's32[2]{0}', space=sflag, size = 0x8, scoped, tag = 'scoped memory for tpu_custom_call.1']
    #allocation5 [shape = 's32[2]{0}', space=sflag, size = 0x8, scoped, tag = 'scoped memory for tpu_custom_call.1']
    #allocation6 [shape = 'u8[65536]{0}', space=vmem, size = 0x10000, scoped, tag = 'input window, operand 1']
    #allocation7 [shape = 's32[2]{0}', space=sflag, size = 0x8, scoped, tag = 'scoped memory for tpu_custom_call.1']
    #allocation8 [shape = 'u8[16384]{0}', space=vmem, size = 0x4000, scoped, tag = 'output window, operand 0']
    %12 = vsyncpa [#allocation4], 0
    %s13 = scalar_lea.sflag [#allocation4], 1
    %14 = vsyncpa %s13, 0
    %15 = vsyncpa [#allocation7], 0
    %s16 = scalar_lea.sflag [#allocation7], 1
    %17 = vsyncpa %s16, 0
    %18 = vsyncpa [#allocation5], 0
    %s19 = scalar_lea.sflag [#allocation5], 1
    %20 = vsyncpa %s19, 0
    loop: start=0, step=1, limit=4
    $region2: #{tpu_custom_call.1} parent=1 // loop_pre_header
      _
    $region3: #{tpu_custom_call.1} parent=1 // loop_header
      %s22 = sphi 0, %s26
      %p23 = scmp.ge.s32.totalorder %s22, 4
      %s29 = sphi 0, %s41
      %s30 = sphi 0, %s37
      %s31 = sphi 0, %s29
      %s32 = sphi 0, %s30
      %s33 = sphi 0, %s31
      %s34 = sphi 0, %s32
      %s46 = sphi 0, %s48
      %s49 = sphi 0, %s46
      %s50 = sphi 0, %s49
      %s66 = sphi 0, %s50
      %s74 = sphi 0, %s76
      %s77 = sphi 0, %s74
      %s78 = sphi 0, %s77
      %s94 = sphi 0, %s78
      %s98 = sphi 0, %s98
      %s100 = sphi 0, %s98
      %s101 = sphi 0, %s100
      %s115 = sphi 0, %s101
      %s119 = sphi 0, %s119
      %s121 = sphi 0, %s119
      %s122 = sphi 0, %s121
      %s136 = sphi 0, %s122
      %s140 = sphi 0, %s140
      %s142 = sphi 0, %s140
      %s143 = sphi 0, %s142
      %s157 = sphi 0, %s143
      %s165 = sphi 0, %s167
      %s168 = sphi 0, %s165
      %s169 = sphi 0, %s168
      %s185 = sphi 0, %s169
    $region4: #{tpu_custom_call.1} parent=1 // loop_header_branch
      %25 = sbr.rel (%p23) target = $region8
    $region5: #{tpu_custom_call.1} parent=1 // loop_body
      %s27 = ssub.s32 %s22, 1
      %s28 = ssub.s32 %s22, 2
      %s35 = sadd.s32 1, %s30
      %p36 = scmp.ge.s32.totalorder %s35, 1
      %s37 = scalar_select %p36, 0, %s35
      %s38 = sadd.s32 1, %s29
      %s39 = scalar_select %p36, %s38, %s29
      %p40 = scmp.ge.s32.totalorder %s39, 2
      %s41 = scalar_select %p40, 0, %s39
      %s42 = ssub.s32 %s29, %s41
      %s43 = ssub.s32 %s30, %s37
      %s44 = sor.u32 %s42, %s43
      %p45 = scmp.eq.s32.totalorder %s44, 0
      %s47 = sadd.s32 %s46, 1
      %s48 = scalar_select %p45, %s46, %s47
      %p51 = pneg %p45
      %p52 = scmp.eq.s32.totalorder %s22, 1
      %p53 = por %p51, %p52
      %p54 = scmp.ne.s32.totalorder %s46, %s49
      %p55 = scmp.eq.s32.totalorder %s22, 0
      %p56 = por %p54, %p55
      %p57 = scmp.ne.s32.totalorder %s46, %s49
      %p58 = scmp.eq.s32.totalorder %s27, 1
      %p59 = por %p57, %p58
      %p60 = scmp.ne.s32.totalorder %s49, %s50
      %p61 = scmp.eq.s32.totalorder %s27, 0
      %p62 = por %p60, %p61
      %p63 = scmp.ne.s32.totalorder %s49, %s50
      %p64 = scmp.eq.s32.totalorder %s28, 1
      %p65 = por %p63, %p64
      %p67 = scmp.ne.s32.totalorder %s50, %s66
      %p68 = scmp.eq.s32.totalorder %s28, 0
      %p69 = por %p67, %p68
      %s70 = ssub.s32 %s29, %s41
      %s71 = ssub.s32 %s30, %s37
      %s72 = sor.u32 %s70, %s71
      %p73 = scmp.eq.s32.totalorder %s72, 0
      %s75 = sadd.s32 %s74, 1
      %s76 = scalar_select %p73, %s74, %s75
      %p79 = pneg %p73
      %p80 = scmp.eq.s32.totalorder %s22, 1
      %p81 = por %p79, %p80
      %p82 = scmp.ne.s32.totalorder %s74, %s77
      %p83 = scmp.eq.s32.totalorder %s22, 0
      %p84 = por %p82, %p83
      %p85 = scmp.ne.s32.totalorder %s74, %s77
      %p86 = scmp.eq.s32.totalorder %s27, 1
      %p87 = por %p85, %p86
      %p88 = scmp.ne.s32.totalorder %s77, %s78
      %p89 = scmp.eq.s32.totalorder %s27, 0
      %p90 = por %p88, %p89
      %p91 = scmp.ne.s32.totalorder %s77, %s78
      %p92 = scmp.eq.s32.totalorder %s28, 1
      %p93 = por %p91, %p92
      %p95 = scmp.ne.s32.totalorder %s78, %s94
      %p96 = scmp.eq.s32.totalorder %s28, 0
      %p97 = por %p95, %p96
      %s99 = sadd.s32 %s98, 1
      %p102 = scmp.eq.s32.totalorder %s22, 1
      %p103 = scmp.ne.s32.totalorder %s98, %s100
      %p104 = scmp.eq.s32.totalorder %s22, 0
      %p105 = por %p103, %p104
      %p106 = scmp.ne.s32.totalorder %s98, %s100
      %p107 = scmp.eq.s32.totalorder %s27, 1
      %p108 = por %p106, %p107
      %p109 = scmp.ne.s32.totalorder %s100, %s101
      %p110 = scmp.eq.s32.totalorder %s27, 0
      %p111 = por %p109, %p110
      %p112 = scmp.ne.s32.totalorder %s100, %s101
      %p113 = scmp.eq.s32.totalorder %s28, 1
      %p114 = por %p112, %p113
      %p116 = scmp.ne.s32.totalorder %s101, %s115
      %p117 = scmp.eq.s32.totalorder %s28, 0
      %p118 = por %p116, %p117
      %s120 = sadd.s32 %s119, 1
      %p123 = scmp.eq.s32.totalorder %s22, 1
      %p124 = scmp.ne.s32.totalorder %s119, %s121
      %p125 = scmp.eq.s32.totalorder %s22, 0
      %p126 = por %p124, %p125
      %p127 = scmp.ne.s32.totalorder %s119, %s121
      %p128 = scmp.eq.s32.totalorder %s27, 1
      %p129 = por %p127, %p128
      %p130 = scmp.ne.s32.totalorder %s121, %s122
      %p131 = scmp.eq.s32.totalorder %s27, 0
      %p132 = por %p130, %p131
      %p133 = scmp.ne.s32.totalorder %s121, %s122
      %p134 = scmp.eq.s32.totalorder %s28, 1
      %p135 = por %p133, %p134
      %p137 = scmp.ne.s32.totalorder %s122, %s136
      %p138 = scmp.eq.s32.totalorder %s28, 0
      %p139 = por %p137, %p138
      %s141 = sadd.s32 %s140, 1
      %p144 = scmp.eq.s32.totalorder %s22, 1
      %p145 = scmp.ne.s32.totalorder %s140, %s142
      %p146 = scmp.eq.s32.totalorder %s22, 0
      %p147 = por %p145, %p146
      %p148 = scmp.ne.s32.totalorder %s140, %s142
      %p149 = scmp.eq.s32.totalorder %s27, 1
      %p150 = por %p148, %p149
      %p151 = scmp.ne.s32.totalorder %s142, %s143
      %p152 = scmp.eq.s32.totalorder %s27, 0
      %p153 = por %p151, %p152
      %p154 = scmp.ne.s32.totalorder %s142, %s143
      %p155 = scmp.eq.s32.totalorder %s28, 1
      %p156 = por %p154, %p155
      %p158 = scmp.ne.s32.totalorder %s143, %s157
      %p159 = scmp.eq.s32.totalorder %s28, 0
      %p160 = por %p158, %p159
      %s161 = ssub.s32 %s29, %s41
      %s162 = ssub.s32 %s30, %s37
      %s163 = sor.u32 %s161, %s162
      %p164 = scmp.eq.s32.totalorder %s163, 0
      %s166 = sadd.s32 %s165, 1
      %s167 = scalar_select %p164, %s165, %s166
      %p170 = pneg %p164
      %p171 = scmp.eq.s32.totalorder %s22, 1
      %p172 = por %p170, %p171
      %p173 = scmp.ne.s32.totalorder %s165, %s168
      %p174 = scmp.eq.s32.totalorder %s22, 0
      %p175 = por %p173, %p174
      %p176 = scmp.ne.s32.totalorder %s165, %s168
      %p177 = scmp.eq.s32.totalorder %s27, 1
      %p178 = por %p176, %p177
      %p179 = scmp.ne.s32.totalorder %s168, %s169
      %p180 = scmp.eq.s32.totalorder %s27, 0
      %p181 = por %p179, %p180
      %p182 = scmp.ne.s32.totalorder %s168, %s169
      %p183 = scmp.eq.s32.totalorder %s28, 1
      %p184 = por %p182, %p183
      %p186 = scmp.ne.s32.totalorder %s169, %s185
      %p187 = scmp.eq.s32.totalorder %s28, 0
      %p188 = por %p186, %p187
      %p189 = scmp.le.s32.totalorder 1, %s22
      %p190 = scmp.lt.s32.totalorder %s22, 3
      %p191 = pnand %p189, %p190
      %p192 = pneg %p191
      // Predicated region
      $region9: #{tpu_custom_call.1} parent=5 // pred_check
        _
      $region10: #{tpu_custom_call.1} parent=5 // pred_check_branch
        %194 = sbr.rel (%p191) target = $region12
      $region11: #{tpu_custom_call.1} parent=5 // pred_region
        %s195 = ssub.s32 %s22, 1
        // Predicated region
        $region13: #{tpu_custom_call.1} parent=11 // pred_check
          %p196 = pneg %p111
        $region14: #{tpu_custom_call.1} parent=11 // pred_check_branch
          %198 = sbr.rel (%p196) target = $region16
        $region15: #{tpu_custom_call.1} parent=11 // pred_region
          _
        $region16: #{tpu_custom_call.1} parent=11 // pred_fallthru
          _
        // Predicated region
        $region17: #{tpu_custom_call.1} parent=11 // pred_check
          %p199 = pneg %p132
        $region18: #{tpu_custom_call.1} parent=11 // pred_check_branch
          %201 = sbr.rel (%p199) target = $region20
        $region19: #{tpu_custom_call.1} parent=11 // pred_region
          _
        $region20: #{tpu_custom_call.1} parent=11 // pred_fallthru
          _
        // Predicated region
        $region21: #{tpu_custom_call.1} parent=11 // pred_check
          %p202 = pneg %p153
        $region22: #{tpu_custom_call.1} parent=11 // pred_check_branch
          %204 = sbr.rel (%p202) target = $region24
        $region23: #{tpu_custom_call.1} parent=11 // pred_region
          _
        $region24: #{tpu_custom_call.1} parent=11 // pred_fallthru
          _
      $region12: #{tpu_custom_call.1} parent=5 // pred_fallthru
        _
      %p205 = scmp.lt.s32.totalorder %s22, 2
      // Predicated region
      $region25: #{tpu_custom_call.1} parent=5 // pred_check
        %p206 = pneg %p205
      $region26: #{tpu_custom_call.1} parent=5 // pred_check_branch
        %208 = sbr.rel (%p206) target = $region28
      $region27: #{tpu_custom_call.1} parent=5 // pred_region
        // Predicated region
        $region29: #{tpu_custom_call.1} parent=27 // pred_check
          %p209 = pneg %p56
        $region30: #{tpu_custom_call.1} parent=27 // pred_check_branch
          %211 = sbr.rel (%p209) target = $region32
        $region31: #{tpu_custom_call.1} parent=27 // pred_region
          %s212 = sand.u32 %s46, 1
          %s213 = scalar_lea.sflag [#allocation4], %s212
          %s214 = sand.u32 %s46, 1
          %s215 = smul.addr %s214, 16
          %s216 = scalar_lea.vmem [#allocation3], %s215
          %s217 = smul.u32 4, %s30
          %s219 = ssub.s32 256, 256
          %220 = vsyncadd %s213, %s219
          %s221 = smul.addr %s29, 4
          %s222 = sadd.s32 %s217, %s221
          %s223 = smul.addr %s222, 64
          %s224 = scalar_lea.hbm %s0, %s223
          %s226 = sshll.u32 %s216, 4
          %s227 = int_to_ptr.vmem [resolvable:$true] %s226
          %229 = dma.hbm_to_vmem [thread:$0]  %s224, 256, %s227, %s213
        $region32: #{tpu_custom_call.1} parent=27 // pred_fallthru
          _
        // Predicated region
        $region33: #{tpu_custom_call.1} parent=27 // pred_check
          %p230 = pneg %p84
        $region34: #{tpu_custom_call.1} parent=27 // pred_check_branch
          %232 = sbr.rel (%p230) target = $region36
        $region35: #{tpu_custom_call.1} parent=27 // pred_region
          %s233 = sand.u32 %s74, 1
          %s234 = scalar_lea.sflag [#allocation7], %s233
          %s235 = sand.u32 %s74, 1
          %s236 = smul.addr %s235, 64
          %s237 = scalar_lea.vmem [#allocation6], %s236
          %s238 = smul.u32 4, %s30
          %s240 = ssub.s32 1024, 1024
          %241 = vsyncadd %s234, %s240
          %s242 = smul.addr %s29, 8
          %s243 = sadd.s32 %s238, %s242
          %s244 = smul.addr %s243, 128
          %s245 = scalar_lea.hbm %s1, %s244
          %s246 = sshll.u32 %s237, 4
          %s247 = int_to_ptr.vmem [resolvable:$true] %s246
          %252 = dma.hbm_to_vmem [thread:$0]  %s245, 1024, %s247, %s234, 512, 512, 32
        $region36: #{tpu_custom_call.1} parent=27 // pred_fallthru
          _
      $region28: #{tpu_custom_call.1} parent=5 // pred_fallthru
        _
      %p253 = scmp.le.s32.totalorder 1, %s22
      %p254 = scmp.lt.s32.totalorder %s22, 3
      %p255 = pnand %p253, %p254
      %p256 = pneg %p255
      // Predicated region
      $region37: #{tpu_custom_call.1} parent=5 // pred_check
        _
      $region38: #{tpu_custom_call.1} parent=5 // pred_check_branch
        %258 = sbr.rel (%p255) target = $region40
      $region39: #{tpu_custom_call.1} parent=5 // pred_region
        %s259 = ssub.s32 %s22, 1
        %s260 = sand.u32 %s49, 1
        %s261 = scalar_lea.sflag [#allocation4], %s260
        %s262 = sand.u32 %s49, 1
        %s263 = smul.addr %s262, 16
        %s264 = scalar_lea.vmem [#allocation3], %s263
        // Predicated region
        $region41: #{tpu_custom_call.1} parent=39 // pred_check
          %p265 = pneg %p62
        $region42: #{tpu_custom_call.1} parent=39 // pred_check_branch
          %267 = sbr.rel (%p265) target = $region44
        $region43: #{tpu_custom_call.1} parent=39 // pred_region
          %268 = dma.done %s261, 256
        $region44: #{tpu_custom_call.1} parent=39 // pred_fallthru
          _
        %s269 = sand.u32 %s77, 1
        %s270 = scalar_lea.sflag [#allocation7], %s269
        %s271 = sand.u32 %s77, 1
        %s272 = smul.addr %s271, 64
        %s273 = scalar_lea.vmem [#allocation6], %s272
        // Predicated region
        $region45: #{tpu_custom_call.1} parent=39 // pred_check
          %p274 = pneg %p90
        $region46: #{tpu_custom_call.1} parent=39 // pred_check_branch
          %276 = sbr.rel (%p274) target = $region48
        $region47: #{tpu_custom_call.1} parent=39 // pred_region
          %277 = dma.done %s270, 1024
        $region48: #{tpu_custom_call.1} parent=39 // pred_fallthru
          _
        %s278 = sand.u32 %s49, 1
        %s279 = scalar_lea.sflag [#allocation4], %s278
        %s280 = sand.u32 %s49, 1
        %s281 = smul.addr %s280, 16
        %s282 = scalar_lea.vmem [#allocation3], %s281
        %p283 = pneg %p62
        %p284 = pneg %p59
        %s285 = sand.u32 %s77, 1
        %s286 = scalar_lea.sflag [#allocation7], %s285
        %s287 = sand.u32 %s77, 1
        %s288 = smul.addr %s287, 64
        %s289 = scalar_lea.vmem [#allocation6], %s288
        %p290 = pneg %p90
        %p291 = pneg %p87
        %p292 = pneg %p111
        %p293 = pneg %p108
        %p294 = pneg %p132
        %p295 = pneg %p129
        %p296 = pneg %p153
        %p297 = pneg %p150
        %p298 = pneg %p181
        %p299 = pneg %p178
        %s300 = sand.u32 %s168, 1
        %s301 = scalar_lea.sflag [#allocation5], %s300
        %s302 = sand.u32 %s168, 1
        %s303 = smul.addr %s302, 16
        %s304 = scalar_lea.vmem [#allocation8], %s303
        %s305 = smul.u32 4, %s32
        %s306 = smul.u32 4, %s32
        %s307 = smul.u32 4, %s32
        %v308 = vld [vmem:[%s264] sm:$0xff]
        %v309 = vld [vmem:[%s264 + $0x8] sm:$0xff]
        %v310 = vld [vmem:[%s2] sm:$0xff]
        %v311 = vld [vmem:[%s2 + $0x8] sm:$0xff]
        %v312 = vld [vmem:[%s273] sm:$0xff]
        %v313 = vld [vmem:[%s273 + $0x8] sm:$0xff]
        %v314 = vld [vmem:[%s273 + $0x10] sm:$0xff]
        %v315 = vld [vmem:[%s273 + $0x18] sm:$0xff]
        %v316 = vld [vmem:[%s273 + $0x20] sm:$0xff]
        %v317 = vld [vmem:[%s273 + $0x28] sm:$0xff]
        %v318 = vld [vmem:[%s273 + $0x30] sm:$0xff]
        %v319 = vld [vmem:[%s273 + $0x38] sm:$0xff]
        %v322 = vcombine.high %v308, %v308
        %v323 = vcombine.high %v309, %v309
        %vm324 = vcmask 31744
        %v326 = vsel %vm324, %v310, 0
        %v329 = vsel %vm324, %v311, 0
        %vm331 = vcmask 1043456
        %v332 = vsel %vm331, %v308, 0
        %v334 = vsel %vm331, %v322, 0
        %v336 = vsel %vm331, %v309, 0
        %v338 = vsel %vm331, %v323, 0
        %340 = vmatprep.subr.mxu0 %v334
        %341 = vmatpush1.msra.mxu0 %v332
        %342 = vmatprep.subr.mxu0 0.0
        %343 = vmatpush1.msra.mxu0 0.0
        %344 = vmatprep.subr.mxu0 0.0
        %345 = vmatpush1.msra.mxu0 0.0
        %346 = vmatprep.subr.mxu0 0.0
        %347 = vmatpush1.msra.mxu0 0.0
        %348 = vmatprep.subr.mxu0 0.0
        %349 = vmatpush1.msra.mxu0 0.0
        %350 = vmatprep.subr.mxu0 0.0
        %351 = vmatpush1.msra.mxu0 0.0
        %352 = vmatprep.subr.mxu0 0.0
        %353 = vmatpush1.msra.mxu0 0.0
        %354 = vmatprep.subr.mxu0 0.0
        %355 = vmatpush1.msra.mxu0 0.0
        %356 = vmatprep.subr.mxu0 0.0
        %357 = vmatpush1.msra.mxu0 0.0
        %358 = vmatprep.subr.mxu0 0.0
        %359 = vmatpush1.msra.mxu0 0.0
        %360 = vmatprep.subr.mxu0 0.0
        %361 = vmatpush1.msra.mxu0 0.0
        %362 = vmatprep.subr.mxu0 0.0
        %363 = vmatpush1.msra.mxu0 0.0
        %364 = vmatprep.subr.mxu0 0.0
        %365 = vmatpush1.msra.mxu0 0.0
        %366 = vmatprep.subr.mxu0 0.0
        %367 = vmatpush1.msra.mxu0 0.0
        %368 = vmatprep.subr.mxu0 0.0
        %369 = vmatpush1.msra.mxu0 0.0
        %370 = vmatprep.subr.mxu0 0.0
        %371 = vmatpush1.msra.mxu0 0.0
        %372 = vmatprep.subr.mxu0 0.0
        %373 = vmatpush1.msra.mxu0 0.0
        %374 = vmatprep.subr.mxu0 0.0
        %375 = vmatpush1.msra.mxu0 0.0
        %376 = vmatprep.subr.mxu0 0.0
        %377 = vmatpush1.msra.mxu0 0.0
        %378 = vmatprep.subr.mxu0 0.0
        %379 = vmatpush1.msra.mxu0 0.0
        %380 = vmatprep.subr.mxu0 0.0
        %381 = vmatpush1.msra.mxu0 0.0
        %382 = vmatprep.subr.mxu0 0.0
        %383 = vmatpush1.msra.mxu0 0.0
        %384 = vmatprep.subr.mxu0 0.0
        %385 = vmatpush1.msra.mxu0 0.0
        %386 = vmatprep.subr.mxu0 0.0
        %387 = vmatpush1.msra.mxu0 0.0
        %388 = vmatprep.subr.mxu0 0.0
        %389 = vmatpush1.msra.mxu0 0.0
        %390 = vmatprep.subr.mxu0 0.0
        %391 = vmatpush1.msra.mxu0 0.0
        %392 = vmatprep.subr.mxu0 0.0
        %393 = vmatpush1.msra.mxu0 0.0
        %394 = vmatprep.subr.mxu0 0.0
        %395 = vmatpush1.msra.mxu0 0.0
        %396 = vmatprep.subr.mxu0 0.0
        %397 = vmatpush1.msra.mxu0 0.0
        %398 = vmatprep.subr.mxu0 0.0
        %399 = vmatpush1.msra.mxu0 0.0
        %400 = vmatprep.subr.mxu0 0.0
        %401 = vmatpush1.msra.mxu0 0.0
        %402 = vmatprep.subr.mxu0 0.0
        %403 = vmatpush1.msra.mxu0 0.0
        %404 = vmatprep.mubr.f32.mxu0 0.0
        %405 = vmatmul.mubr.f32.gmra.mrb[0].mxu0 %v326
        %v406 = vpop.f32.mrb[0].mxu0
        %v407 = vadd.f32 %v312, %v406
        %v408 = vpop.f32.mrb[0].mxu0
        %v409 = vadd.f32 %v313, %v408
        %410 = vmatprep.mubr.f32.mxu0 0.0
        %411 = vmatmul.mubr.f32.gmra.mrb[0].mxu0 %v329
        %v412 = vpop.f32.mrb[0].mxu0
        %v413 = vadd.f32 %v316, %v412
        %v414 = vpop.f32.mrb[0].mxu0
        %v415 = vadd.f32 %v317, %v414
        %416 = vdwg.mxu0
        %417 = vmatprep.subr.mxu0 %v338
        %418 = vmatpush1.msra.mxu0 %v336
        %419 = vmatprep.subr.mxu0 0.0
        %420 = vmatpush1.msra.mxu0 0.0
        %421 = vmatprep.subr.mxu0 0.0
        %422 = vmatpush1.msra.mxu0 0.0
        %423 = vmatprep.subr.mxu0 0.0
        %424 = vmatpush1.msra.mxu0 0.0
        %425 = vmatprep.subr.mxu0 0.0
        %426 = vmatpush1.msra.mxu0 0.0
        %427 = vmatprep.subr.mxu0 0.0
        %428 = vmatpush1.msra.mxu0 0.0
        %429 = vmatprep.subr.mxu0 0.0
        %430 = vmatpush1.msra.mxu0 0.0
        %431 = vmatprep.subr.mxu0 0.0
        %432 = vmatpush1.msra.mxu0 0.0
        %433 = vmatprep.subr.mxu0 0.0
        %434 = vmatpush1.msra.mxu0 0.0
        %435 = vmatprep.subr.mxu0 0.0
        %436 = vmatpush1.msra.mxu0 0.0
        %437 = vmatprep.subr.mxu0 0.0
        %438 = vmatpush1.msra.mxu0 0.0
        %439 = vmatprep.subr.mxu0 0.0
        %440 = vmatpush1.msra.mxu0 0.0
        %441 = vmatprep.subr.mxu0 0.0
        %442 = vmatpush1.msra.mxu0 0.0
        %443 = vmatprep.subr.mxu0 0.0
        %444 = vmatpush1.msra.mxu0 0.0
        %445 = vmatprep.subr.mxu0 0.0
        %446 = vmatpush1.msra.mxu0 0.0
        %447 = vmatprep.subr.mxu0 0.0
        %448 = vmatpush1.msra.mxu0 0.0
        %449 = vmatprep.subr.mxu0 0.0
        %450 = vmatpush1.msra.mxu0 0.0
        %451 = vmatprep.subr.mxu0 0.0
        %452 = vmatpush1.msra.mxu0 0.0
        %453 = vmatprep.subr.mxu0 0.0
        %454 = vmatpush1.msra.mxu0 0.0
        %455 = vmatprep.subr.mxu0 0.0
        %456 = vmatpush1.msra.mxu0 0.0
        %457 = vmatprep.subr.mxu0 0.0
        %458 = vmatpush1.msra.mxu0 0.0
        %459 = vmatprep.subr.mxu0 0.0
        %460 = vmatpush1.msra.mxu0 0.0
        %461 = vmatprep.subr.mxu0 0.0
        %462 = vmatpush1.msra.mxu0 0.0
        %463 = vmatprep.subr.mxu0 0.0
        %464 = vmatpush1.msra.mxu0 0.0
        %465 = vmatprep.subr.mxu0 0.0
        %466 = vmatpush1.msra.mxu0 0.0
        %467 = vmatprep.subr.mxu0 0.0
        %468 = vmatpush1.msra.mxu0 0.0
        %469 = vmatprep.subr.mxu0 0.0
        %470 = vmatpush1.msra.mxu0 0.0
        %471 = vmatprep.subr.mxu0 0.0
        %472 = vmatpush1.msra.mxu0 0.0
        %473 = vmatprep.subr.mxu0 0.0
        %474 = vmatpush1.msra.mxu0 0.0
        %475 = vmatprep.subr.mxu0 0.0
        %476 = vmatpush1.msra.mxu0 0.0
        %477 = vmatprep.subr.mxu0 0.0
        %478 = vmatpush1.msra.mxu0 0.0
        %479 = vmatprep.subr.mxu0 0.0
        %480 = vmatpush1.msra.mxu0 0.0
        %481 = vmatprep.mubr.f32.mxu0 0.0
        %482 = vmatmul.mubr.f32.gmra.mrb[0].mxu0 %v326
        %v483 = vpop.f32.mrb[0].mxu0
        %v484 = vadd.f32 %v314, %v483
        %v485 = vpop.f32.mrb[0].mxu0
        %v486 = vadd.f32 %v315, %v485
        %487 = vmatprep.mubr.f32.mxu0 0.0
        %488 = vmatmul.mubr.f32.gmra.mrb[0].mxu0 %v329
        %v489 = vpop.f32.mrb[0].mxu0
        %v490 = vadd.f32 %v318, %v489
        %v491 = vpop.f32.mrb[0].mxu0
        %v492 = vadd.f32 %v319, %v491
        %493 = vdwg.mxu0
        %v494 = vmul.f32 %v407, 0.01
        %v495 = vmul.f32 %v409, 0.01
        %v496 = vmul.f32 %v484, 0.01
        %v497 = vmul.f32 %v486, 0.01
        %v498 = vmul.f32 %v413, 0.01
        %v499 = vmul.f32 %v415, 0.01
        %v500 = vmul.f32 %v490, 0.01
        %v501 = vmul.f32 %v492, 0.01
        %v502 = vmax.f32 %v407, %v494
        %v503 = vmax.f32 %v409, %v495
        %v504 = vmax.f32 %v484, %v496
        %v505 = vmax.f32 %v486, %v497
        %v506 = vmax.f32 %v413, %v498
        %v507 = vmax.f32 %v415, %v499
        %v508 = vmax.f32 %v490, %v500
        %v509 = vmax.f32 %v492, %v501
        %v510 = vld [vmem:[%s3] sm:$0x1]
        %v511 = vld [vmem:[#allocation2] sm:$0x1]
        %513 = vset.pattern.permute.xlu0 0
        %514 = vperm.xlu0 %513, %v511
        %v515 = vpop.permute.xlu0 %514
        %v517 = vlaneseq
        %v518 = vshrl.u32 %v517, 7
        %v519 = vsub.s32 0, %v518
        %v520 = vrot.slane %v515, %v519
        %vm521 = vcmask 130048
        %v523 = vsel %vm521, %v510, 0
        %525 = vmatprep.subr.mxu0 %v503
        %526 = vmatpush1.msra.mxu0 %v502
        %527 = vmatprep.subr.mxu0 %v507
        %528 = vmatpush1.msra.mxu0 %v506
        %529 = vmatprep.subr.mxu0 0.0
        %530 = vmatpush1.msra.mxu0 0.0
        %531 = vmatprep.subr.mxu0 0.0
        %532 = vmatpush1.msra.mxu0 0.0
        %533 = vmatprep.subr.mxu0 0.0
        %534 = vmatpush1.msra.mxu0 0.0
        %535 = vmatprep.subr.mxu0 0.0
        %536 = vmatpush1.msra.mxu0 0.0
        %537 = vmatprep.subr.mxu0 0.0
        %538 = vmatpush1.msra.mxu0 0.0
        %539 = vmatprep.subr.mxu0 0.0
        %540 = vmatpush1.msra.mxu0 0.0
        %541 = vmatprep.subr.mxu0 0.0
        %542 = vmatpush1.msra.mxu0 0.0
        %543 = vmatprep.subr.mxu0 0.0
        %544 = vmatpush1.msra.mxu0 0.0
        %545 = vmatprep.subr.mxu0 0.0
        %546 = vmatpush1.msra.mxu0 0.0
        %547 = vmatprep.subr.mxu0 0.0
        %548 = vmatpush1.msra.mxu0 0.0
        %549 = vmatprep.subr.mxu0 0.0
        %550 = vmatpush1.msra.mxu0 0.0
        %551 = vmatprep.subr.mxu0 0.0
        %552 = vmatpush1.msra.mxu0 0.0
        %553 = vmatprep.subr.mxu0 0.0
        %554 = vmatpush1.msra.mxu0 0.0
        %555 = vmatprep.subr.mxu0 0.0
        %556 = vmatpush1.msra.mxu0 0.0
        %557 = vmatprep.subr.mxu0 0.0
        %558 = vmatpush1.msra.mxu0 0.0
        %559 = vmatprep.subr.mxu0 0.0
        %560 = vmatpush1.msra.mxu0 0.0
        %561 = vmatprep.subr.mxu0 0.0
        %562 = vmatpush1.msra.mxu0 0.0
        %563 = vmatprep.subr.mxu0 0.0
        %564 = vmatpush1.msra.mxu0 0.0
        %565 = vmatprep.subr.mxu0 0.0
        %566 = vmatpush1.msra.mxu0 0.0
        %567 = vmatprep.subr.mxu0 0.0
        %568 = vmatpush1.msra.mxu0 0.0
        %569 = vmatprep.subr.mxu0 0.0
        %570 = vmatpush1.msra.mxu0 0.0
        %571 = vmatprep.subr.mxu0 0.0
        %572 = vmatpush1.msra.mxu0 0.0
        %573 = vmatprep.subr.mxu0 0.0
        %574 = vmatpush1.msra.mxu0 0.0
        %575 = vmatprep.subr.mxu0 0.0
        %576 = vmatpush1.msra.mxu0 0.0
        %577 = vmatprep.subr.mxu0 0.0
        %578 = vmatpush1.msra.mxu0 0.0
        %579 = vmatprep.subr.mxu0 0.0
        %580 = vmatpush1.msra.mxu0 0.0
        %581 = vmatprep.subr.mxu0 0.0
        %582 = vmatpush1.msra.mxu0 0.0
        %583 = vmatprep.subr.mxu0 0.0
        %584 = vmatpush1.msra.mxu0 0.0
        %585 = vmatprep.subr.mxu0 0.0
        %586 = vmatpush1.msra.mxu0 0.0
        %587 = vmatprep.subr.mxu0 0.0
        %588 = vmatpush1.msra.mxu0 0.0
        %589 = vmatprep.mubr.f32.mxu0 0.0
        %590 = vmatmul.mubr.f32.gmra.mrb[0].mxu0 %v523
        %v591 = vpop.f32.mrb[0].mxu0
        %v592 = vadd.f32 %v520, %v591
        %v593 = vpop.f32.mrb[0].mxu0
        %v594 = vadd.f32 %v520, %v593
        %595 = vdwg.mxu0
        %596 = vmatprep.subr.mxu0 %v505
        %597 = vmatpush1.msra.mxu0 %v504
        %598 = vmatprep.subr.mxu0 %v509
        %599 = vmatpush1.msra.mxu0 %v508
        %600 = vmatprep.subr.mxu0 0.0
        %601 = vmatpush1.msra.mxu0 0.0
        %602 = vmatprep.subr.mxu0 0.0
        %603 = vmatpush1.msra.mxu0 0.0
        %604 = vmatprep.subr.mxu0 0.0
        %605 = vmatpush1.msra.mxu0 0.0
        %606 = vmatprep.subr.mxu0 0.0
        %607 = vmatpush1.msra.mxu0 0.0
        %608 = vmatprep.subr.mxu0 0.0
        %609 = vmatpush1.msra.mxu0 0.0
        %610 = vmatprep.subr.mxu0 0.0
        %611 = vmatpush1.msra.mxu0 0.0
        %612 = vmatprep.subr.mxu0 0.0
        %613 = vmatpush1.msra.mxu0 0.0
        %614 = vmatprep.subr.mxu0 0.0
        %615 = vmatpush1.msra.mxu0 0.0
        %616 = vmatprep.subr.mxu0 0.0
        %617 = vmatpush1.msra.mxu0 0.0
        %618 = vmatprep.subr.mxu0 0.0
        %619 = vmatpush1.msra.mxu0 0.0
        %620 = vmatprep.subr.mxu0 0.0
        %621 = vmatpush1.msra.mxu0 0.0
        %622 = vmatprep.subr.mxu0 0.0
        %623 = vmatpush1.msra.mxu0 0.0
        %624 = vmatprep.subr.mxu0 0.0
        %625 = vmatpush1.msra.mxu0 0.0
        %626 = vmatprep.subr.mxu0 0.0
        %627 = vmatpush1.msra.mxu0 0.0
        %628 = vmatprep.subr.mxu0 0.0
        %629 = vmatpush1.msra.mxu0 0.0
        %630 = vmatprep.subr.mxu0 0.0
        %631 = vmatpush1.msra.mxu0 0.0
        %632 = vmatprep.subr.mxu0 0.0
        %633 = vmatpush1.msra.mxu0 0.0
        %634 = vmatprep.subr.mxu0 0.0
        %635 = vmatpush1.msra.mxu0 0.0
        %636 = vmatprep.subr.mxu0 0.0
        %637 = vmatpush1.msra.mxu0 0.0
        %638 = vmatprep.subr.mxu0 0.0
        %639 = vmatpush1.msra.mxu0 0.0
        %640 = vmatprep.subr.mxu0 0.0
        %641 = vmatpush1.msra.mxu0 0.0
        %642 = vmatprep.subr.mxu0 0.0
        %643 = vmatpush1.msra.mxu0 0.0
        %644 = vmatprep.subr.mxu0 0.0
        %645 = vmatpush1.msra.mxu0 0.0
        %646 = vmatprep.subr.mxu0 0.0
        %647 = vmatpush1.msra.mxu0 0.0
        %648 = vmatprep.subr.mxu0 0.0
        %649 = vmatpush1.msra.mxu0 0.0
        %650 = vmatprep.subr.mxu0 0.0
        %651 = vmatpush1.msra.mxu0 0.0
        %652 = vmatprep.subr.mxu0 0.0
        %653 = vmatpush1.msra.mxu0 0.0
        %654 = vmatprep.subr.mxu0 0.0
        %655 = vmatpush1.msra.mxu0 0.0
        %656 = vmatprep.subr.mxu0 0.0
        %657 = vmatpush1.msra.mxu0 0.0
        %658 = vmatprep.subr.mxu0 0.0
        %659 = vmatpush1.msra.mxu0 0.0
        %660 = vmatprep.mubr.f32.mxu0 0.0
        %661 = vmatmul.mubr.f32.gmra.mrb[0].mxu0 %v523
        %v662 = vpop.f32.mrb[0].mxu0
        %v663 = vadd.f32 %v520, %v662
        %v664 = vpop.f32.mrb[0].mxu0
        %v665 = vadd.f32 %v520, %v664
        %666 = vdwg.mxu0
        %v667 = vxor.u32 %v592, 2147483648
        %v668 = vxor.u32 %v594, 2147483648
        %v669 = vxor.u32 %v663, 2147483648
        %v670 = vxor.u32 %v665, 2147483648
        %v671 = vmul.f32 %v667, 1.442695
        %v672 = vpow.pop %v671
        %v673 = vmul.f32 %v668, 1.442695
        %v674 = vpow.pop %v673
        %v675 = vmul.f32 %v669, 1.442695
        %v676 = vpow.pop %v675
        %v677 = vmul.f32 %v670, 1.442695
        %v678 = vpow.pop %v677
        %v679 = vadd.f32 %v672, 1.0
        %v680 = vadd.f32 %v674, 1.0
        %v681 = vadd.f32 %v676, 1.0
        %v682 = vadd.f32 %v678, 1.0
        %v683 = vrcp.pop %v679
        %v684 = vmul.f32 1.0, %v683
        %v685 = vrcp.pop %v680
        %v686 = vmul.f32 1.0, %v685
        %v687 = vrcp.pop %v681
        %v688 = vmul.f32 1.0, %v687
        %v689 = vrcp.pop %v682
        %v690 = vmul.f32 1.0, %v689
        %v691 = vlaneseq
        %v692 = vshrl.u32 %v691, 7
        %v693 = vsub.s32 0, %v692
        %v694 = vrot.slane %v684, %v693
        %v695 = vlaneseq
        %v696 = vshrl.u32 %v695, 7
        %v697 = vsub.s32 0, %v696
        %v698 = vrot.slane %v686, %v697
        %v699 = vlaneseq
        %v700 = vshrl.u32 %v699, 7
        %v701 = vsub.s32 0, %v700
        %v702 = vrot.slane %v688, %v701
        %v703 = vlaneseq
        %v704 = vshrl.u32 %v703, 7
        %v705 = vsub.s32 0, %v704
        %v706 = vrot.slane %v690, %v705
        %v711 = vcombine.low %v694, %v698
        %v712 = vcombine.low %v702, %v706
        %v715 = vmul.f32 %v308, %v711
        %v716 = vmul.f32 %v309, %v712
        %717 = vst [vmem:[%s304] sm:$0xff] %v715
        %718 = vst [vmem:[%s304 + $0x8] sm:$0xff] %v716
        %s719 = sand.u32 %s168, 1
        %s720 = scalar_lea.sflag [#allocation5], %s719
        %s721 = sand.u32 %s168, 1
        %s722 = smul.addr %s721, 16
        %s723 = scalar_lea.vmem [#allocation8], %s722
        // Predicated region
        $region49: #{tpu_custom_call.1} parent=39 // pred_check
          %p724 = pneg %p178
        $region50: #{tpu_custom_call.1} parent=39 // pred_check_branch
          %726 = sbr.rel (%p724) target = $region52
        $region51: #{tpu_custom_call.1} parent=39 // pred_region
          %s727 = smul.u32 4, %s32
          %s729 = ssub.s32 256, 256
          %730 = vsyncadd %s720, %s729
          %s731 = smul.addr %s31, 4
          %s732 = sadd.s32 %s727, %s731
          %s733 = smul.addr %s732, 64
          %s734 = scalar_lea.hbm %s5, %s733
          %s736 = sshll.u32 %s723, 4
          %s737 = int_to_ptr.vmem [resolvable:$true] %s736
          %739 = dma.vmem_to_hbm [thread:$0]  %s737, 256, %s734, %s720
        $region52: #{tpu_custom_call.1} parent=39 // pred_fallthru
          _
      $region40: #{tpu_custom_call.1} parent=5 // pred_fallthru
        _
      %p740 = scmp.le.s32.totalorder 2, %s22
      // Predicated region
      $region53: #{tpu_custom_call.1} parent=5 // pred_check
        %p741 = pneg %p740
      $region54: #{tpu_custom_call.1} parent=5 // pred_check_branch
        %743 = sbr.rel (%p741) target = $region56
      $region55: #{tpu_custom_call.1} parent=5 // pred_region
        %s744 = ssub.s32 %s22, 2
        // Predicated region
        $region57: #{tpu_custom_call.1} parent=55 // pred_check
          %p745 = pneg %p184
        $region58: #{tpu_custom_call.1} parent=55 // pred_check_branch
          %747 = sbr.rel (%p745) target = $region60
        $region59: #{tpu_custom_call.1} parent=55 // pred_region
          %s748 = sand.u32 %s169, 1
          %s749 = scalar_lea.sflag [#allocation5], %s748
          %s750 = sand.u32 %s169, 1
          %s751 = smul.addr %s750, 16
          %s752 = scalar_lea.vmem [#allocation8], %s751
          %753 = dma.done %s749, 256
        $region60: #{tpu_custom_call.1} parent=55 // pred_fallthru
          _
      $region56: #{tpu_custom_call.1} parent=5 // pred_fallthru
        _
    $region6: #{tpu_custom_call.1} parent=1 // loop_footer
      %s26 = sadd.s32 1, %s22
    $region7: #{tpu_custom_call.1} parent=1 // loop_footer_branch
      %21 = sbr.rel target = $region3
    $region8: #{tpu_custom_call.1} parent=1 // loop_exit
      _
    %754 = vsyncpa [#allocation4], 1
    %s755 = scalar_lea.sflag [#allocation4], 1
    %756 = vsyncpa %s755, 1
    %757 = vsyncpa [#allocation7], 1
    %s758 = scalar_lea.sflag [#allocation7], 1
    %759 = vsyncpa %s758, 1
    %760 = vsyncpa [#allocation5], 1
    %s761 = scalar_lea.sflag [#allocation5], 1
    %762 = vsyncpa %s761, 1

</llo_original>
